<compile_context>
chip_gen: v5e
topology: v5e:2x2
jax: 0.10.0
libtpu: 0.0.40
codegen_flags: <defaults>
</compile_context>

<pallas_src>
import functools

import jax
import jax.numpy as jnp
from jax.experimental import pallas as pl
from jax.experimental.pallas import tpu as pltpu


def _focal_loss_kernel(pred_ref, target_ref, out_ref, *, alpha, gamma,
                       num_classes, ignore_idx, hw, reduce_tile):
    """One (batch, row-tile) block.

    pred_ref  : (1, C, S, 128) logits (any float dtype; upcast to f32 here)
    target_ref: (1, S, 128)    int32 labels
    out_ref   : (1, 8, 128)    per-tile partial loss sum   (reduce_tile=True)
                (1, S, 128)    per-pixel loss              (reduce_tile=False)
    """
    logits = pred_ref[0].astype(jnp.float32)          # (C, S, 128)
    tgt = target_ref[0]                                # (S, 128) int32
    C, S, L = logits.shape

    # softmax #1 over the class axis (leading, non-layout axis -> pure VPU
    # maxes/adds across (S, 128) slabs, no cross-lane XLU work).
    m1 = jnp.max(logits, axis=0)                       # (S, 128)
    e1 = jnp.exp(logits - m1[None])                    # (C, S, 128)  EUP
    inv1 = 1.0 / jnp.sum(e1, axis=0)                   # (S, 128)
    p1 = e1 * inv1[None]                               # (C, S, 128) in (0, 1]

    # softmax #2 (the reference applies softmax twice).  p1 is in [0, 1] so
    # the max-shift can be dropped safely.
    e2 = jnp.exp(p1)                                   # (C, S, 128)  EUP
    s2 = jnp.sum(e2, axis=0)                           # (S, 128)

    # Gather the target-class numerator with an iota compare + masked sum
    # (no materialized f32 one-hot tensor, no extra (C,S,128) multiply).
    cls = jax.lax.broadcasted_iota(jnp.int32, (C, S, L), 0)
    e2_t = jnp.sum(jnp.where(cls == tgt[None], e2, 0.0), axis=0)   # (S, 128)

    # Validity mask: in-range label, not ignored (mirrors _label_to_onehot),
    # and inside the real H*W extent (handles 128-padding and the ragged last
    # row-tile, whose out-of-bounds block reads contain garbage).
    valid = jnp.logical_and(tgt >= 0, tgt < num_classes)
    for c in ignore_idx:
        valid = jnp.logical_and(valid, tgt != c)
    row_iota = jax.lax.broadcasted_iota(jnp.int32, (S, L), 0)
    lane_iota = jax.lax.broadcasted_iota(jnp.int32, (S, L), 1)
    flat_idx = (pl.program_id(1) * S + row_iota) * 128 + lane_iota
    valid = jnp.logical_and(valid, flat_idx < hw)
    valid_f = valid.astype(jnp.float32)                # (S, 128)

    # p_t = softmax(softmax(logits))[target]; 1.0 where invalid so log/pow
    # stay finite (where() selects, so NaNs from garbage lanes never leak).
    p_t = jnp.where(valid, e2_t / s2, 1.0)             # (S, 128)

    # focal term (1 - p_t)^gamma; small-integer gamma -> repeated multiplies.
    q = 1.0 - p_t
    if float(gamma) == int(gamma) and 0 <= int(gamma) <= 4:
        focal = jnp.ones_like(q)
        for _ in range(int(gamma)):
            focal = focal * q                          # VPU only
    else:
        focal = jnp.power(q, gamma)
    ce = -jnp.log(p_t)                                 # (S, 128)  EUP, rows only

    loss = alpha * focal * ce * valid_f                # (S, 128)

    if reduce_tile:
        # Per-tile partial sum: collapse rows (one cheap XLU reduce), then park
        # the (1, 128) result on sublane 0 of a dense (8, 128) slab so the
        # output store is unmasked and lane-dense.
        row_sum = jnp.sum(loss, axis=0, keepdims=True)             # (1, 128)
        sub = jax.lax.broadcasted_iota(jnp.int32, (8, L), 0)
        out_ref[0] = jnp.where(sub == 0, row_sum, 0.0)             # (8, 128)
    else:
        out_ref[0] = loss


def _pick_row_tile(num_classes, rows, batch, pred_itemsize):
    """Choose S (spatial rows per tile, lane width fixed at 128)."""
    # Generation-aware VMEM budget: query physical VMEM and leave headroom.
    try:
        cap = int(pltpu.get_tpu_info().vmem_capacity_bytes)
    except Exception:
        cap = 64 << 20                      # conservative (v7x physical VMEM)
    vmem_limit = int(min(cap // 2, 48 << 20))
    budget = int(vmem_limit * 0.75)

    # Per-row footprint estimate: 2x double-buffered pred block, ~5 live
    # (C, S, 128) f32 intermediates (e1, p1, e2, iota, where-temp), and ~12
    # (S, 128) f32/int32 rows (target/out blocks + row temporaries).
    per_row = 128 * (2 * num_classes * pred_itemsize + 5 * num_classes * 4
                     + 12 * 4)
    s_budget = max(8, (budget // per_row) // 8 * 8)
    S = min(512, s_budget)                  # cap T = S*128 at 65536 lanes
    if S >= rows:
        S = rows                            # full-extent block (always legal)
    num_tiles = pl.cdiv(rows, S)

    # v7x megacore: avoid a degenerate single-step grid when splittable.
    if batch * num_tiles < 2 and rows >= 16:
        S = max(8, ((rows + 1) // 2 + 7) // 8 * 8)
        num_tiles = pl.cdiv(rows, S)
    return S, num_tiles, vmem_limit


def focal_loss_pallas(pred, target, *, num_classes, alpha, gamma,
                      ignore_idx=None, reduction='sum', row_tile=None):
    """pred: (N, C, H, W) float logits; target: (N, H, W) int labels."""
    assert num_classes > 1, "num_classes == 1 (sigmoid path) not implemented"
    # TODO(synk): num_classes == 1 double-sigmoid path not implemented.
    N, C, H, W = pred.shape
    assert C == num_classes
    assert pred.shape[0] == target.shape[0], \
        'pred tensor and target tensor must have same batch size'
    HW = H * W

    pred_f = pred.reshape(N, C, HW)                     # free view, no astype
    tgt_f = target.reshape(N, HW).astype(jnp.int32)
    if HW % 128 != 0:
        # TODO(synk): fallback pad (materializes a pred copy) only when H*W is
        # not a multiple of 128; padded positions are masked in-kernel.
        pad = (-HW) % 128
        pred_f = jnp.pad(pred_f, ((0, 0), (0, 0), (0, pad)))
        tgt_f = jnp.pad(tgt_f, ((0, 0), (0, pad)), constant_values=-1)
    rows = pred_f.shape[-1] // 128
    pred_r = pred_f.reshape(N, C, rows, 128)            # sublane-dense layout
    tgt_r = tgt_f.reshape(N, rows, 128)

    pred_itemsize = jnp.dtype(pred.dtype).itemsize
    S, num_tiles, vmem_limit = _pick_row_tile(C, rows, N, pred_itemsize)
    if row_tile is not None:
        S = int(row_tile)
        if S < rows:
            S = max(8, (S // 8) * 8)
        else:
            S = rows
        num_tiles = pl.cdiv(rows, S)

    reduce_tile = reduction in ('sum', 'mean')
    kernel = functools.partial(
        _focal_loss_kernel,
        alpha=float(alpha), gamma=float(gamma),
        num_classes=num_classes,
        ignore_idx=tuple(ignore_idx) if ignore_idx is not None else (),
        hw=HW, reduce_tile=reduce_tile)

    if reduce_tile:
        out_shape = jax.ShapeDtypeStruct((N, num_tiles * 8, 128), jnp.float32)
        out_spec = pl.BlockSpec((1, 8, 128), lambda b, t: (b, t, 0))
    else:
        out_shape = jax.ShapeDtypeStruct((N, num_tiles * S, 128), jnp.float32)
        out_spec = pl.BlockSpec((1, S, 128), lambda b, t: (b, t, 0))

    out = pl.pallas_call(
        kernel,
        grid=(N, num_tiles),
        in_specs=[
            pl.BlockSpec((1, C, S, 128), lambda b, t: (b, 0, t, 0)),  # pred
            pl.BlockSpec((1, S, 128), lambda b, t: (b, t, 0)),        # target
        ],
        out_specs=out_spec,
        out_shape=out_shape,
        compiler_params=pltpu.CompilerParams(
            dimension_semantics=("parallel", "parallel"),
            vmem_limit_bytes=vmem_limit),
    )(pred_r, tgt_r)

    if reduction == 'sum':
        return jnp.sum(out)
    elif reduction == 'mean':
        return jnp.sum(out) / (N * H * W)
    elif reduction == 'none':
        per_px = out.reshape(N, num_tiles * S * 128)[:, :HW]
        return per_px.reshape(N, H, W)
    else:
        raise NotImplementedError(f'Invalid reduction mode: {reduction}')


class FocalLoss:
    """JAX/Pallas analog of the PyTorch FocalLoss module."""

    def __init__(self, num_classes, alpha, gamma, ignore_idx=None,
                 reduction='sum'):
        self.num_classes = num_classes
        self.alpha = alpha
        self.gamma = gamma
        self.ignore_idx = ignore_idx
        self.reduction = reduction

    def __call__(self, pred, target):
        return focal_loss_pallas(
            pred, target,
            num_classes=self.num_classes, alpha=self.alpha, gamma=self.gamma,
            ignore_idx=self.ignore_idx, reduction=self.reduction)


def _reference_focal_loss(pred, target, *, num_classes, alpha, gamma,
                          ignore_idx, reduction='sum'):
    """Pure-JAX reference matching the PyTorch code path (double softmax)."""
    p = jax.nn.softmax(pred, axis=1)
    p = jax.nn.softmax(p, axis=1)
    ignore = tuple(ignore_idx) if ignore_idx is not None else ()
    onehot = jnp.stack(
        [jnp.zeros(target.shape, jnp.float32) if c in ignore
         else (target == c).astype(jnp.float32)
         for c in range(num_classes)], axis=1)               # (N, C, H, W)
    fl = alpha * jnp.power(1.0 - p, gamma) * (-jnp.log(p)) * onehot
    fl = jnp.sum(fl, axis=1)                                 # (N, H, W)
    if reduction == 'sum':
        return jnp.sum(fl)
    elif reduction == 'mean':
        return jnp.mean(fl)
    return fl


if __name__ == "__main__":
    key = jax.random.PRNGKey(0)
    k_pred, k_tgt, k_pred2, k_tgt2 = jax.random.split(key, 4)

    N, C, H, W = 2, 4, 16, 16
    alpha, gamma = 0.25, 2.0
    ignore_idx = [0]

    pred = jax.random.normal(k_pred, (N, C, H, W), dtype=jnp.float32)
    target = jax.random.randint(k_tgt, (N, H, W), 0, C, dtype=jnp.int32)

    # sum reduction (main path: in-kernel partial reduction)
    loss_fn = FocalLoss(num_classes=C, alpha=alpha, gamma=gamma,
                        ignore_idx=ignore_idx, reduction='sum')
    loss = jax.block_until_ready(loss_fn(pred, target))
    ref = jax.block_until_ready(_reference_focal_loss(
        pred, target, num_classes=C, alpha=alpha, gamma=gamma,
        ignore_idx=ignore_idx, reduction='sum'))
    assert jnp.allclose(loss, ref, rtol=1e-5, atol=1e-5), (loss, ref)

    # 'none' reduction (per-pixel output path)
    loss_none = jax.block_until_ready(focal_loss_pallas(
        pred, target, num_classes=C, alpha=alpha, gamma=gamma,
        ignore_idx=ignore_idx, reduction='none'))
    ref_none = jax.block_until_ready(_reference_focal_loss(
        pred, target, num_classes=C, alpha=alpha, gamma=gamma,
        ignore_idx=ignore_idx, reduction='none'))
    assert jnp.allclose(loss_none, ref_none, rtol=1e-5, atol=1e-5)

    # non-128-divisible spatial extent (exercises pad + ragged masking)
    H2, W2 = 24, 24
    pred2 = jax.random.normal(k_pred2, (N, C, H2, W2), dtype=jnp.float32)
    target2 = jax.random.randint(k_tgt2, (N, H2, W2), 0, C, dtype=jnp.int32)
    loss2 = jax.block_until_ready(focal_loss_pallas(
        pred2, target2, num_classes=C, alpha=alpha, gamma=gamma,
        ignore_idx=ignore_idx, reduction='sum'))
    ref2 = jax.block_until_ready(_reference_focal_loss(
        pred2, target2, num_classes=C, alpha=alpha, gamma=gamma,
        ignore_idx=ignore_idx, reduction='sum'))
    assert jnp.allclose(loss2, ref2, rtol=1e-5, atol=1e-5), (loss2, ref2)

    print("KERNEL_OK")
</pallas_src>

<mosaic_0001>
module attributes {stable_mosaic.version = 11 : i64} {
  func.func @_focal_loss_kernel(%arg0: i32, %arg1: i32, %arg2: memref<1x4x2x128xf32, #tpu.memory_space<vmem>>, %arg3: memref<1x2x128xi32, #tpu.memory_space<vmem>>, %arg4: memref<1x8x128xf32, #tpu.memory_space<vmem>>) attributes {dimension_semantics = [#tpu.dimension_semantics<parallel>, #tpu.dimension_semantics<parallel>], iteration_bounds = array<i64: 2, 1>, scalar_prefetch = 0 : i64, scratch_operands = 0 : i64, tpu.core_type = #tpu.core_type<tc>, window_params = [{transform_indices = @transform_0, window_bounds = array<i64: 1, 4, 2, 128>}, {transform_indices = @transform_1, window_bounds = array<i64: 1, 2, 128>}, {transform_indices = @transform_2, window_bounds = array<i64: 1, 8, 128>}]} {
    %c0 = arith.constant 0 : index
    %c0_0 = arith.constant 0 : index
    %c0_1 = arith.constant 0 : index
    %c0_2 = arith.constant 0 : index
    %0 = vector.load %arg2[%c0, %c0_0, %c0_1, %c0_2] : memref<1x4x2x128xf32, #tpu.memory_space<vmem>>, vector<1x4x2x128xf32>
    %1 = vector.shape_cast %0 : vector<1x4x2x128xf32> to vector<4x2x128xf32>
    %c0_3 = arith.constant 0 : index
    %c0_4 = arith.constant 0 : index
    %c0_5 = arith.constant 0 : index
    %2 = vector.load %arg3[%c0_3, %c0_4, %c0_5] : memref<1x2x128xi32, #tpu.memory_space<vmem>>, vector<1x2x128xi32>
    %3 = vector.shape_cast %2 : vector<1x2x128xi32> to vector<2x128xi32>
    %cst = arith.constant dense<0xFF800000> : vector<2x128xf32>
    %4 = vector.multi_reduction <maximumf>, %1, %cst [0] : vector<4x2x128xf32> to vector<2x128xf32>
    %5 = vector.shape_cast %4 : vector<2x128xf32> to vector<1x2x128xf32>
    %6 = vector.broadcast %5 : vector<1x2x128xf32> to vector<4x2x128xf32>
    %7 = arith.subf %1, %6 : vector<4x2x128xf32>
    %8 = math.exp %7 : vector<4x2x128xf32>
    %cst_6 = arith.constant dense<0.000000e+00> : vector<2x128xf32>
    %9 = vector.multi_reduction <add>, %8, %cst_6 [0] : vector<4x2x128xf32> to vector<2x128xf32>
    %cst_7 = arith.constant 1.000000e+00 : f32
    %10 = vector.broadcast %cst_7 : f32 to vector<2x128xf32>
    %11 = arith.divf %10, %9 : vector<2x128xf32>
    %12 = vector.shape_cast %11 : vector<2x128xf32> to vector<1x2x128xf32>
    %13 = vector.broadcast %12 : vector<1x2x128xf32> to vector<4x2x128xf32>
    %14 = arith.mulf %8, %13 : vector<4x2x128xf32>
    %15 = math.exp %14 : vector<4x2x128xf32>
    %cst_8 = arith.constant dense<0.000000e+00> : vector<2x128xf32>
    %16 = vector.multi_reduction <add>, %15, %cst_8 [0] : vector<4x2x128xf32> to vector<2x128xf32>
    %17 = tpu.iota {dimensions = array<i32: 0>} : vector<4x2x128xi32>
    %18 = vector.shape_cast %3 : vector<2x128xi32> to vector<1x2x128xi32>
    %19 = vector.broadcast %18 : vector<1x2x128xi32> to vector<4x2x128xi32>
    %20 = arith.cmpi eq, %17, %19 : vector<4x2x128xi32>
    %cst_9 = arith.constant 0.000000e+00 : f32
    %21 = vector.broadcast %cst_9 : f32 to vector<4x2x128xf32>
    %22 = arith.select %20, %15, %21 : vector<4x2x128xi1>, vector<4x2x128xf32>
    %cst_10 = arith.constant dense<0.000000e+00> : vector<2x128xf32>
    %23 = vector.multi_reduction <add>, %22, %cst_10 [0] : vector<4x2x128xf32> to vector<2x128xf32>
    %c0_i32 = arith.constant 0 : i32
    %24 = vector.broadcast %c0_i32 : i32 to vector<2x128xi32>
    %25 = arith.cmpi sge, %3, %24 : vector<2x128xi32>
    %c4_i32 = arith.constant 4 : i32
    %26 = vector.broadcast %c4_i32 : i32 to vector<2x128xi32>
    %27 = arith.cmpi slt, %3, %26 : vector<2x128xi32>
    %28 = arith.andi %25, %27 : vector<2x128xi1>
    %c0_i32_11 = arith.constant 0 : i32
    %29 = vector.broadcast %c0_i32_11 : i32 to vector<2x128xi32>
    %30 = arith.cmpi ne, %3, %29 : vector<2x128xi32>
    %31 = arith.andi %28, %30 : vector<2x128xi1>
    %32 = tpu.iota {dimensions = array<i32: 0>} : vector<2x128xi32>
    %33 = tpu.iota {dimensions = array<i32: 1>} : vector<2x128xi32>
    %c2_i32 = arith.constant 2 : i32
    %34 = arith.muli %arg1, %c2_i32 : i32
    %35 = vector.broadcast %34 : i32 to vector<2x128xi32>
    %36 = arith.addi %35, %32 : vector<2x128xi32>
    %c128_i32 = arith.constant 128 : i32
    %37 = vector.broadcast %c128_i32 : i32 to vector<2x128xi32>
    %38 = arith.muli %36, %37 : vector<2x128xi32>
    %39 = arith.addi %38, %33 : vector<2x128xi32>
    %c256_i32 = arith.constant 256 : i32
    %40 = vector.broadcast %c256_i32 : i32 to vector<2x128xi32>
    %41 = arith.cmpi slt, %39, %40 : vector<2x128xi32>
    %42 = arith.andi %31, %41 : vector<2x128xi1>
    %43 = arith.extui %42 : vector<2x128xi1> to vector<2x128xi32>
    %44 = arith.sitofp %43 : vector<2x128xi32> to vector<2x128xf32>
    %45 = arith.divf %23, %16 : vector<2x128xf32>
    %cst_12 = arith.constant 1.000000e+00 : f32
    %46 = vector.broadcast %cst_12 : f32 to vector<2x128xf32>
    %47 = arith.select %42, %45, %46 : vector<2x128xi1>, vector<2x128xf32>
    %cst_13 = arith.constant 1.000000e+00 : f32
    %48 = vector.broadcast %cst_13 : f32 to vector<2x128xf32>
    %49 = arith.subf %48, %47 : vector<2x128xf32>
    %cst_14 = arith.constant 1.000000e+00 : f32
    %50 = vector.broadcast %cst_14 : f32 to vector<2x128xf32>
    %51 = arith.mulf %50, %49 : vector<2x128xf32>
    %52 = arith.mulf %51, %49 : vector<2x128xf32>
    %53 = math.log %47 : vector<2x128xf32>
    %cst_15 = arith.constant 0.000000e+00 : f32
    %54 = vector.broadcast %cst_15 : f32 to vector<2x128xf32>
    %55 = arith.subf %54, %53 : vector<2x128xf32>
    %cst_16 = arith.constant 2.500000e-01 : f32
    %56 = vector.broadcast %cst_16 : f32 to vector<2x128xf32>
    %57 = arith.mulf %56, %52 : vector<2x128xf32>
    %58 = arith.mulf %57, %55 : vector<2x128xf32>
    %59 = arith.mulf %58, %44 : vector<2x128xf32>
    %cst_17 = arith.constant dense<0.000000e+00> : vector<128xf32>
    %60 = vector.multi_reduction <add>, %59, %cst_17 [0] : vector<2x128xf32> to vector<128xf32>
    %61 = vector.shape_cast %60 : vector<128xf32> to vector<1x128xf32>
    %62 = tpu.iota {dimensions = array<i32: 0>} : vector<8x128xi32>
    %c0_i32_18 = arith.constant 0 : i32
    %63 = vector.broadcast %c0_i32_18 : i32 to vector<8x128xi32>
    %64 = arith.cmpi eq, %62, %63 : vector<8x128xi32>
    %cst_19 = arith.constant 0.000000e+00 : f32
    %65 = vector.shape_cast %61 : vector<1x128xf32> to vector<1x128xf32>
    %66 = vector.broadcast %65 : vector<1x128xf32> to vector<8x128xf32>
    %67 = vector.broadcast %cst_19 : f32 to vector<8x128xf32>
    %68 = arith.select %64, %66, %67 : vector<8x128xi1>, vector<8x128xf32>
    %c0_20 = arith.constant 0 : index
    %c0_21 = arith.constant 0 : index
    %c0_22 = arith.constant 0 : index
    %69 = vector.load %arg4[%c0_20, %c0_21, %c0_22] : memref<1x8x128xf32, #tpu.memory_space<vmem>>, vector<1x8x128xf32>
    %70 = vector.shape_cast %69 : vector<1x8x128xf32> to vector<8x128xf32>
    %71 = vector.shape_cast %68 : vector<8x128xf32> to vector<1x8x128xf32>
    tpu.vector_store %arg4[%c0_20, %c0_21, %c0_22], %71 {strides = array<i32>} : memref<1x8x128xf32, #tpu.memory_space<vmem>>, vector<1x8x128xf32>,
    return
  }
  func.func @transform_0(%arg0: i32, %arg1: i32) -> (i32, i32, i32, i32) {
    %c0_i32 = arith.constant 0 : i32
    %c0_i32_0 = arith.constant 0 : i32
    %c0_i32_1 = arith.constant 0 : i32
    return %arg0, %c0_i32, %arg1, %c0_i32_0 : i32, i32, i32, i32
  }
  func.func @transform_1(%arg0: i32, %arg1: i32) -> (i32, i32, i32) {
    %c0_i32 = arith.constant 0 : i32
    %c0_i32_0 = arith.constant 0 : i32
    return %arg0, %arg1, %c0_i32 : i32, i32, i32
  }
  func.func @transform_2(%arg0: i32, %arg1: i32) -> (i32, i32, i32) {
    %c0_i32 = arith.constant 0 : i32
    %c0_i32_0 = arith.constant 0 : i32
    return %arg0, %arg1, %c0_i32 : i32, i32, i32
  }
}

</mosaic_0001>

<llo_original>
// kernel: tpu_custom_call.1
$region0: #{tpu_custom_call.1}
  #allocation0 [shape = 'u32[]', space=smem, size = 0x4, offset = 0x4, fixed_abs, tag = 'smem constant byte address 0x4 - core index']
  #allocation1 [shape = 'u32[72,128]{1,0:T(1,128)}', space=vmem, size = 0x9000, scoped, tag = 'internal scratch']
  %s0 = inlined_call_operand.hbm [shape: f32[2,4,2,128], index: 0, kind: input, shape index: {}]
  %s1 = inlined_call_operand.hbm [shape: s32[2,2,128], index: 1, kind: input, shape index: {}]
  %s2 = inlined_call_operand.hbm [shape: f32[2,8,128], index: 2, kind: output, shape index: {}]
  %s3 = sld [smem:[#allocation0]]
  $region49: #{tpu_custom_call.1} parent=0
    _
  %s5 = ssub.s32 1, %s3
  %s6 = scalar_select 0, %s5, %s3
  $region1: #{tpu_custom_call.1} parent=0
    #allocation2 [shape = 'u8[8192]{0}', space=vmem, size = 0x2000, scoped, tag = 'input window, operand 0']
    #allocation3 [shape = 's32[2]{0}', space=sflag, size = 0x8, scoped, tag = 'scoped memory for tpu_custom_call.1']
    #allocation4 [shape = 's32[2]{0}', space=sflag, size = 0x8, scoped, tag = 'scoped memory for tpu_custom_call.1']
    #allocation5 [shape = 'u8[2048]{0}', space=vmem, size = 0x800, scoped, tag = 'input window, operand 1']
    #allocation6 [shape = 's32[2]{0}', space=sflag, size = 0x8, scoped, tag = 'scoped memory for tpu_custom_call.1']
    #allocation7 [shape = 'u8[8192]{0}', space=vmem, size = 0x2000, scoped, tag = 'output window, operand 0']
    %7 = vsyncpa [#allocation3], 0
    %s8 = scalar_lea.sflag [#allocation3], 1
    %9 = vsyncpa %s8, 0
    %10 = vsyncpa [#allocation6], 0
    %s11 = scalar_lea.sflag [#allocation6], 1
    %12 = vsyncpa %s11, 0
    %13 = vsyncpa [#allocation4], 0
    %s14 = scalar_lea.sflag [#allocation4], 1
    %15 = vsyncpa %s14, 0
    loop: start=0, step=1, limit=4
    $region2: #{tpu_custom_call.1} parent=1 // loop_pre_header
      _
    $region3: #{tpu_custom_call.1} parent=1 // loop_header
      %s17 = sphi 0, %s21
      %p18 = scmp.ge.s32.totalorder %s17, 4
      %s24 = sphi 0, %s36
      %s25 = sphi 0, %s32
      %s26 = sphi 0, %s24
      %s27 = sphi 0, %s25
      %s28 = sphi 0, %s26
      %s29 = sphi 0, %s27
      %s41 = sphi 0, %s43
      %s44 = sphi 0, %s41
      %s45 = sphi 0, %s44
      %s61 = sphi 0, %s45
      %s69 = sphi 0, %s71
      %s72 = sphi 0, %s69
      %s73 = sphi 0, %s72
      %s89 = sphi 0, %s73
      %s97 = sphi 0, %s99
      %s100 = sphi 0, %s97
      %s101 = sphi 0, %s100
      %s117 = sphi 0, %s101
    $region4: #{tpu_custom_call.1} parent=1 // loop_header_branch
      %20 = sbr.rel (%p18) target = $region8
    $region5: #{tpu_custom_call.1} parent=1 // loop_body
      %s22 = ssub.s32 %s17, 1
      %s23 = ssub.s32 %s17, 2
      %s30 = sadd.s32 1, %s25
      %p31 = scmp.ge.s32.totalorder %s30, 1
      %s32 = scalar_select %p31, 0, %s30
      %s33 = sadd.s32 1, %s24
      %s34 = scalar_select %p31, %s33, %s24
      %p35 = scmp.ge.s32.totalorder %s34, 2
      %s36 = scalar_select %p35, 0, %s34
      %s37 = ssub.s32 %s24, %s36
      %s38 = ssub.s32 %s25, %s32
      %s39 = sor.u32 %s37, %s38
      %p40 = scmp.eq.s32.totalorder %s39, 0
      %s42 = sadd.s32 %s41, 1
      %s43 = scalar_select %p40, %s41, %s42
      %p46 = pneg %p40
      %p47 = scmp.eq.s32.totalorder %s17, 1
      %p48 = por %p46, %p47
      %p49 = scmp.ne.s32.totalorder %s41, %s44
      %p50 = scmp.eq.s32.totalorder %s17, 0
      %p51 = por %p49, %p50
      %p52 = scmp.ne.s32.totalorder %s41, %s44
      %p53 = scmp.eq.s32.totalorder %s22, 1
      %p54 = por %p52, %p53
      %p55 = scmp.ne.s32.totalorder %s44, %s45
      %p56 = scmp.eq.s32.totalorder %s22, 0
      %p57 = por %p55, %p56
      %p58 = scmp.ne.s32.totalorder %s44, %s45
      %p59 = scmp.eq.s32.totalorder %s23, 1
      %p60 = por %p58, %p59
      %p62 = scmp.ne.s32.totalorder %s45, %s61
      %p63 = scmp.eq.s32.totalorder %s23, 0
      %p64 = por %p62, %p63
      %s65 = ssub.s32 %s24, %s36
      %s66 = ssub.s32 %s25, %s32
      %s67 = sor.u32 %s65, %s66
      %p68 = scmp.eq.s32.totalorder %s67, 0
      %s70 = sadd.s32 %s69, 1
      %s71 = scalar_select %p68, %s69, %s70
      %p74 = pneg %p68
      %p75 = scmp.eq.s32.totalorder %s17, 1
      %p76 = por %p74, %p75
      %p77 = scmp.ne.s32.totalorder %s69, %s72
      %p78 = scmp.eq.s32.totalorder %s17, 0
      %p79 = por %p77, %p78
      %p80 = scmp.ne.s32.totalorder %s69, %s72
      %p81 = scmp.eq.s32.totalorder %s22, 1
      %p82 = por %p80, %p81
      %p83 = scmp.ne.s32.totalorder %s72, %s73
      %p84 = scmp.eq.s32.totalorder %s22, 0
      %p85 = por %p83, %p84
      %p86 = scmp.ne.s32.totalorder %s72, %s73
      %p87 = scmp.eq.s32.totalorder %s23, 1
      %p88 = por %p86, %p87
      %p90 = scmp.ne.s32.totalorder %s73, %s89
      %p91 = scmp.eq.s32.totalorder %s23, 0
      %p92 = por %p90, %p91
      %s93 = ssub.s32 %s24, %s36
      %s94 = ssub.s32 %s25, %s32
      %s95 = sor.u32 %s93, %s94
      %p96 = scmp.eq.s32.totalorder %s95, 0
      %s98 = sadd.s32 %s97, 1
      %s99 = scalar_select %p96, %s97, %s98
      %p102 = pneg %p96
      %p103 = scmp.eq.s32.totalorder %s17, 1
      %p104 = por %p102, %p103
      %p105 = scmp.ne.s32.totalorder %s97, %s100
      %p106 = scmp.eq.s32.totalorder %s17, 0
      %p107 = por %p105, %p106
      %p108 = scmp.ne.s32.totalorder %s97, %s100
      %p109 = scmp.eq.s32.totalorder %s22, 1
      %p110 = por %p108, %p109
      %p111 = scmp.ne.s32.totalorder %s100, %s101
      %p112 = scmp.eq.s32.totalorder %s22, 0
      %p113 = por %p111, %p112
      %p114 = scmp.ne.s32.totalorder %s100, %s101
      %p115 = scmp.eq.s32.totalorder %s23, 1
      %p116 = por %p114, %p115
      %p118 = scmp.ne.s32.totalorder %s101, %s117
      %p119 = scmp.eq.s32.totalorder %s23, 0
      %p120 = por %p118, %p119
      %p121 = scmp.le.s32.totalorder 1, %s17
      %p122 = scmp.lt.s32.totalorder %s17, 3
      %p123 = pnand %p121, %p122
      %p124 = pneg %p123
      // Predicated region
      $region9: #{tpu_custom_call.1} parent=5 // pred_check
        _
      $region10: #{tpu_custom_call.1} parent=5 // pred_check_branch
        %126 = sbr.rel (%p123) target = $region12
      $region11: #{tpu_custom_call.1} parent=5 // pred_region
        %s127 = ssub.s32 %s17, 1
      $region12: #{tpu_custom_call.1} parent=5 // pred_fallthru
        _
      %p128 = scmp.lt.s32.totalorder %s17, 2
      // Predicated region
      $region13: #{tpu_custom_call.1} parent=5 // pred_check
        %p129 = pneg %p128
      $region14: #{tpu_custom_call.1} parent=5 // pred_check_branch
        %131 = sbr.rel (%p129) target = $region16
      $region15: #{tpu_custom_call.1} parent=5 // pred_region
        // Predicated region
        $region17: #{tpu_custom_call.1} parent=15 // pred_check
          %p132 = pneg %p51
        $region18: #{tpu_custom_call.1} parent=15 // pred_check_branch
          %134 = sbr.rel (%p132) target = $region20
        $region19: #{tpu_custom_call.1} parent=15 // pred_region
          %s135 = sand.u32 %s41, 1
          %s136 = scalar_lea.sflag [#allocation3], %s135
          %s137 = sand.u32 %s41, 1
          %s138 = smul.addr %s137, 8
          %s139 = scalar_lea.vmem [#allocation2], %s138
          %141 = vsyncadd %s136, 0
          %s142 = smul.addr %s24, 4
          %s143 = sadd.s32 %s25, %s142
          %s144 = smul.addr %s143, 2
          %s145 = scalar_lea.hbm %s0, %s144
          %s146 = sshll.u32 %s145, 4
          %s147 = int_to_ptr.hbm [resolvable:$true] %s146
          %s148 = sshll.u32 %s139, 4
          %s149 = int_to_ptr.vmem [resolvable:$true] %s148
          %154 = dma.hbm_to_vmem [thread:$0]  %s147, 128, %s149, %s136, 32, 32, 2
        $region20: #{tpu_custom_call.1} parent=15 // pred_fallthru
          _
        // Predicated region
        $region21: #{tpu_custom_call.1} parent=15 // pred_check
          %p155 = pneg %p79
        $region22: #{tpu_custom_call.1} parent=15 // pred_check_branch
          %157 = sbr.rel (%p155) target = $region24
        $region23: #{tpu_custom_call.1} parent=15 // pred_region
          %s158 = sand.u32 %s69, 1
          %s159 = scalar_lea.sflag [#allocation6], %s158
          %s160 = sand.u32 %s69, 1
          %s161 = smul.addr %s160, 2
          %s162 = scalar_lea.vmem [#allocation5], %s161
          %164 = vsyncadd %s159, 0
          %s165 = sadd.s32 %s25, %s24
          %s166 = smul.addr %s165, 2
          %s167 = scalar_lea.hbm %s1, %s166
          %s169 = sshll.u32 %s167, 4
          %s170 = int_to_ptr.hbm [resolvable:$true] %s169
          %s171 = sshll.u32 %s162, 4
          %s172 = int_to_ptr.vmem [resolvable:$true] %s171
          %174 = dma.hbm_to_vmem [thread:$0]  %s170, 32, %s172, %s159
        $region24: #{tpu_custom_call.1} parent=15 // pred_fallthru
          _
      $region16: #{tpu_custom_call.1} parent=5 // pred_fallthru
        _
      %p175 = scmp.le.s32.totalorder 1, %s17
      %p176 = scmp.lt.s32.totalorder %s17, 3
      %p177 = pnand %p175, %p176
      %p178 = pneg %p177
      // Predicated region
      $region25: #{tpu_custom_call.1} parent=5 // pred_check
        _
      $region26: #{tpu_custom_call.1} parent=5 // pred_check_branch
        %180 = sbr.rel (%p177) target = $region28
      $region27: #{tpu_custom_call.1} parent=5 // pred_region
        %s181 = ssub.s32 %s17, 1
        %s182 = sand.u32 %s44, 1
        %s183 = scalar_lea.sflag [#allocation3], %s182
        %s184 = sand.u32 %s44, 1
        %s185 = smul.addr %s184, 8
        %s186 = scalar_lea.vmem [#allocation2], %s185
        // Predicated region
        $region29: #{tpu_custom_call.1} parent=27 // pred_check
          %p187 = pneg %p57
        $region30: #{tpu_custom_call.1} parent=27 // pred_check_branch
          %189 = sbr.rel (%p187) target = $region32
        $region31: #{tpu_custom_call.1} parent=27 // pred_region
          %191 = dma.done %s183, 128
        $region32: #{tpu_custom_call.1} parent=27 // pred_fallthru
          _
        %s192 = sand.u32 %s72, 1
        %s193 = scalar_lea.sflag [#allocation6], %s192
        %s194 = sand.u32 %s72, 1
        %s195 = smul.addr %s194, 2
        %s196 = scalar_lea.vmem [#allocation5], %s195
        // Predicated region
        $region33: #{tpu_custom_call.1} parent=27 // pred_check
          %p197 = pneg %p85
        $region34: #{tpu_custom_call.1} parent=27 // pred_check_branch
          %199 = sbr.rel (%p197) target = $region36
        $region35: #{tpu_custom_call.1} parent=27 // pred_region
          %201 = dma.done %s193, 32
        $region36: #{tpu_custom_call.1} parent=27 // pred_fallthru
          _
        %s202 = sand.u32 %s44, 1
        %s203 = scalar_lea.sflag [#allocation3], %s202
        %s204 = sand.u32 %s44, 1
        %s205 = smul.addr %s204, 8
        %s206 = scalar_lea.vmem [#allocation2], %s205
        %p207 = pneg %p57
        %p208 = pneg %p54
        %s209 = sand.u32 %s72, 1
        %s210 = scalar_lea.sflag [#allocation6], %s209
        %s211 = sand.u32 %s72, 1
        %s212 = smul.addr %s211, 2
        %s213 = scalar_lea.vmem [#allocation5], %s212
        %p214 = pneg %p85
        %p215 = pneg %p82
        %p216 = pneg %p113
        %p217 = pneg %p110
        %s218 = sand.u32 %s100, 1
        %s219 = scalar_lea.sflag [#allocation4], %s218
        %s220 = sand.u32 %s100, 1
        %s221 = smul.addr %s220, 8
        %s222 = scalar_lea.vmem [#allocation7], %s221
        %v223 = vld [vmem:[%s186] sm:$0x3]
        %v224 = vld [vmem:[%s186 + $0x2] sm:$0x3]
        %v225 = vld [vmem:[%s186 + $0x4] sm:$0x3]
        %v226 = vld [vmem:[%s186 + $0x6] sm:$0x3]
        %v227 = vld [vmem:[%s196] sm:$0x3]
        %vm228 = vcmask 1041408
        %v229 = vsel %vm228, %v223, -inf
        %v230 = vsel %vm228, %v224, -inf
        %v231 = vsel %vm228, %v225, -inf
        %v232 = vsel %vm228, %v226, -inf
        %v233 = vmax.f32 %v229, %v230
        %v234 = vmax.f32 %v231, %v232
        %v235 = vmax.f32 %v233, %v234
        %v236 = vsub.f32 %v223, %v235
        %v237 = vsub.f32 %v224, %v235
        %v238 = vsub.f32 %v225, %v235
        %v239 = vsub.f32 %v226, %v235
        %v240 = vmul.f32 %v236, 1.442695
        %v241 = vpow.pop %v240
        %v242 = vmul.f32 %v237, 1.442695
        %v243 = vpow.pop %v242
        %v244 = vmul.f32 %v238, 1.442695
        %v245 = vpow.pop %v244
        %v246 = vmul.f32 %v239, 1.442695
        %v247 = vpow.pop %v246
        %v248 = vsel %vm228, %v241, 0.0
        %v249 = vsel %vm228, %v243, 0.0
        %v250 = vadd.f32 %v248, %v249
        %v251 = vsel %vm228, %v245, 0.0
        %v252 = vadd.f32 %v250, %v251
        %v253 = vsel %vm228, %v247, 0.0
        %v254 = vadd.f32 %v252, %v253
        %v255 = vrcp.pop %v254
        %v256 = vmul.f32 %v254, %v255
        %v257 = vsub.f32 1.0, %v256
        %v258 = vmul.f32 %v255, %v257
        %v259 = vadd.f32 %v255, %v258
        %vm260 = vweird.f32 %v254
        %vm261 = vweird.f32 %v255
        %vm262 = vmor %vm260, %vm261
        %v263 = vsel %vm262, %v255, %v259
        %v264 = vand.u32 2147483647, %v254
        %vm265 = vcmp.eq.f32.partialorder %v264, 8.507059e+37
        %v266 = vand.u32 %v254, 2147483648
        %v267 = vor.u32 1.1754944e-38, %v266
        %v268 = vsel %vm265, %v267, %v263
        %v269 = vmul.f32 1.0, %v268
        %v270 = vmul.f32 %v241, %v269
        %v271 = vmul.f32 %v243, %v269
        %v272 = vmul.f32 %v245, %v269
        %v273 = vmul.f32 %v247, %v269
        %v274 = vmul.f32 %v270, 1.442695
        %v275 = vpow.pop %v274
        %v276 = vmul.f32 %v271, 1.442695
        %v277 = vpow.pop %v276
        %v278 = vmul.f32 %v272, 1.442695
        %v279 = vpow.pop %v278
        %v280 = vmul.f32 %v273, 1.442695
        %v281 = vpow.pop %v280
        %v282 = vsel %vm228, %v275, 0.0
        %v283 = vsel %vm228, %v277, 0.0
        %v284 = vadd.f32 %v282, %v283
        %v285 = vsel %vm228, %v279, 0.0
        %v286 = vadd.f32 %v284, %v285
        %v287 = vsel %vm228, %v281, 0.0
        %v288 = vadd.f32 %v286, %v287
        %vm289 = vcmp.eq.s32.totalorder %v227, 0
        %vm290 = vcmp.eq.s32.totalorder %v227, 1
        %vm291 = vcmp.eq.s32.totalorder %v227, 2
        %vm292 = vcmp.eq.s32.totalorder %v227, 3
        %v293 = vsel %vm289, %v275, 0.0
        %v294 = vsel %vm290, %v277, 0.0
        %v295 = vsel %vm291, %v279, 0.0
        %v296 = vsel %vm292, %v281, 0.0
        %v297 = vsel %vm228, %v293, 0.0
        %v298 = vsel %vm228, %v294, 0.0
        %v299 = vadd.f32 %v297, %v298
        %v300 = vsel %vm228, %v295, 0.0
        %v301 = vadd.f32 %v299, %v300
        %v302 = vsel %vm228, %v296, 0.0
        %v303 = vadd.f32 %v301, %v302
        %vm304 = vcmp.ge.s32.totalorder %v227, 0
        %vm305 = vcmp.lt.s32.totalorder %v227, 4
        %vm306 = vmand %vm304, %vm305
        %vm307 = vcmp.ne.s32.totalorder %v227, 0
        %vm308 = vmand %vm306, %vm307
        %v309 = vlaneseq
        %v310 = vshrl.u32 %v309, 7
        %v311 = vlaneseq
        %v312 = vand.u32 %v311, 127
        %s313 = smul.u32 %s27, 2
        %v314 = vstv %s313
        %v315 = vadd.s32 %v314, %v310
        %v316 = vmul.u32 %v315, 128
        %v317 = vadd.s32 %v316, %v312
        %vm318 = vcmp.lt.s32.totalorder %v317, 256
        %vm319 = vmand %vm308, %vm318
        %v320 = vsel %vm319, 1, 0
        %v321 = vcvt.s32.f32 %v320
        %v322 = vrcp.pop %v288
        %v323 = vmul.f32 %v288, %v322
        %v324 = vsub.f32 1.0, %v323
        %v325 = vmul.f32 %v322, %v324
        %v326 = vadd.f32 %v322, %v325
        %vm327 = vweird.f32 %v288
        %vm328 = vweird.f32 %v322
        %vm329 = vmor %vm327, %vm328
        %v330 = vsel %vm329, %v322, %v326
        %v331 = vand.u32 2147483647, %v288
        %vm332 = vcmp.eq.f32.partialorder %v331, 8.507059e+37
        %v333 = vand.u32 %v288, 2147483648
        %v334 = vor.u32 1.1754944e-38, %v333
        %v335 = vsel %vm332, %v334, %v330
        %v336 = vmul.f32 %v303, %v335
        %v337 = vsel %vm319, %v336, 1.0
        %v338 = vsub.f32 1.0, %v337
        %v339 = vmul.f32 %v338, %v338
        %v340 = vlog2.pop %v337
        %v341 = vmul.f32 %v340, 0.6931472
        %v342 = vsub.f32 0.0, %v341
        %v343 = vmul.f32 %v339, 0.25
        %v344 = vmul.f32 %v343, %v342
        %v345 = vmul.f32 %v344, %v321
        %v346 = vsel %vm228, %v345, 0.0
        %v347 = vrot.slane %v346, 4
        %v348 = vadd.f32 %v346, %v347
        %v349 = vrot.slane %v348, 2
        %v350 = vadd.f32 %v348, %v349
        %v351 = vrot.slane %v350, 1
        %v352 = vadd.f32 %v350, %v351
        %vm353 = vcmp.eq.s32.totalorder %v310, 0
        %v354 = vsel %vm353, %v352, 0.0
        %355 = vst [vmem:[%s222] sm:$0xff] %v354
        %s356 = sand.u32 %s100, 1
        %s357 = scalar_lea.sflag [#allocation4], %s356
        %s358 = sand.u32 %s100, 1
        %s359 = smul.addr %s358, 8
        %s360 = scalar_lea.vmem [#allocation7], %s359
        // Predicated region
        $region37: #{tpu_custom_call.1} parent=27 // pred_check
          %p361 = pneg %p110
        $region38: #{tpu_custom_call.1} parent=27 // pred_check_branch
          %363 = sbr.rel (%p361) target = $region40
        $region39: #{tpu_custom_call.1} parent=27 // pred_region
          %365 = vsyncadd %s357, 0
          %s366 = sadd.s32 %s27, %s26
          %s367 = smul.addr %s366, 8
          %s368 = scalar_lea.hbm %s2, %s367
          %s370 = sshll.u32 %s360, 4
          %s371 = int_to_ptr.vmem [resolvable:$true] %s370
          %s372 = sshll.u32 %s368, 4
          %s373 = int_to_ptr.hbm [resolvable:$true] %s372
          %375 = dma.vmem_to_hbm [thread:$0]  %s371, 128, %s373, %s357
        $region40: #{tpu_custom_call.1} parent=27 // pred_fallthru
          _
      $region28: #{tpu_custom_call.1} parent=5 // pred_fallthru
        _
      %p376 = scmp.le.s32.totalorder 2, %s17
      // Predicated region
      $region41: #{tpu_custom_call.1} parent=5 // pred_check
        %p377 = pneg %p376
      $region42: #{tpu_custom_call.1} parent=5 // pred_check_branch
        %379 = sbr.rel (%p377) target = $region44
      $region43: #{tpu_custom_call.1} parent=5 // pred_region
        %s380 = ssub.s32 %s17, 2
        // Predicated region
        $region45: #{tpu_custom_call.1} parent=43 // pred_check
          %p381 = pneg %p116
        $region46: #{tpu_custom_call.1} parent=43 // pred_check_branch
          %383 = sbr.rel (%p381) target = $region48
        $region47: #{tpu_custom_call.1} parent=43 // pred_region
          %s384 = sand.u32 %s101, 1
          %s385 = scalar_lea.sflag [#allocation4], %s384
          %s386 = sand.u32 %s101, 1
          %s387 = smul.addr %s386, 8
          %s388 = scalar_lea.vmem [#allocation7], %s387
          %390 = dma.done %s385, 128
        $region48: #{tpu_custom_call.1} parent=43 // pred_fallthru
          _
      $region44: #{tpu_custom_call.1} parent=5 // pred_fallthru
        _
    $region6: #{tpu_custom_call.1} parent=1 // loop_footer
      %s21 = sadd.s32 1, %s17
    $region7: #{tpu_custom_call.1} parent=1 // loop_footer_branch
      %16 = sbr.rel target = $region3
    $region8: #{tpu_custom_call.1} parent=1 // loop_exit
      _
    %391 = vsyncpa [#allocation3], 1
    %s392 = scalar_lea.sflag [#allocation3], 1
    %393 = vsyncpa %s392, 1
    %394 = vsyncpa [#allocation6], 1
    %s395 = scalar_lea.sflag [#allocation6], 1
    %396 = vsyncpa %s395, 1
    %397 = vsyncpa [#allocation4], 1
    %s398 = scalar_lea.sflag [#allocation4], 1
    %399 = vsyncpa %s398, 1

</llo_original>
